<compile_context>
chip_gen: v7x
topology: tpu7x:2x2x1
jax: 0.10.0
libtpu: 0.0.40
codegen_flags: <defaults>
</compile_context>

<pallas_src>
import functools

import jax
import jax.numpy as jnp
from jax.experimental import pallas as pl
from jax.experimental.pallas import tpu as pltpu

D_IN = 60      # logical input features
D_OUT = 60     # logical output features
D_PAD = 128    # lane-dense padding of the 60-wide dims
H1, H2, H3 = 128, 256, 128


def _round_up(n, m):
    return (n + m - 1) // m * m


def mlp_kernel(x_ref,
               w1_ref, b1_ref,
               w2_ref, b2_ref,
               w3_ref, b3_ref,
               w4_ref, b4_ref,
               o_ref):
    """Fused 4-layer MLP with ReLU after every layer (one batch tile).

    x_ref : (TB, 128) f32       w1_ref: (128, 128) bf16   b1_ref: (1, 128) f32
    w2_ref: (128, 256) bf16     b2_ref: (1, 256) f32
    w3_ref: (256, 128) bf16     b3_ref: (1, 128) f32
    w4_ref: (128, 128) bf16     b4_ref: (1, 128) f32
    o_ref : (TB, 128) f32
    """
    x = x_ref[...]

    h = jnp.dot(x.astype(jnp.bfloat16), w1_ref[...],
                preferred_element_type=jnp.float32)
    h = jnp.maximum(h + b1_ref[...], 0.0)

    h = jnp.dot(h.astype(jnp.bfloat16), w2_ref[...],
                preferred_element_type=jnp.float32)
    h = jnp.maximum(h + b2_ref[...], 0.0)

    h = jnp.dot(h.astype(jnp.bfloat16), w3_ref[...],
                preferred_element_type=jnp.float32)
    h = jnp.maximum(h + b3_ref[...], 0.0)

    h = jnp.dot(h.astype(jnp.bfloat16), w4_ref[...],
                preferred_element_type=jnp.float32)
    h = jnp.maximum(h + b4_ref[...], 0.0)

    o_ref[...] = h.astype(o_ref.dtype)


def prepare_params(params):
    """One-time conversion from PyTorch layout to kernel layout.

    - transpose W from (out, in) -> (in, out)
    - zero-pad the 60-wide dims to 128 (lane-dense)
    - cast weights to bf16 (MXU inputs); biases stay f32 (f32 VPU add)
    """
    w1 = jnp.zeros((D_PAD, H1), jnp.float32).at[:D_IN, :].set(params["fc1_w"].T)
    w2 = params["fc2_w"].T
    w3 = params["fc3_w"].T
    w4 = jnp.zeros((H3, D_PAD), jnp.float32).at[:, :D_OUT].set(params["fc4_w"].T)

    b1 = params["fc1_b"][None, :]
    b2 = params["fc2_b"][None, :]
    b3 = params["fc3_b"][None, :]
    b4 = jnp.zeros((1, D_PAD), jnp.float32).at[:, :D_OUT].set(
        params["fc4_b"][None, :])

    return {
        "w1": w1.astype(jnp.bfloat16), "b1": b1,
        "w2": w2.astype(jnp.bfloat16), "b2": b2,
        "w3": w3.astype(jnp.bfloat16), "b3": b3,
        "w4": w4.astype(jnp.bfloat16), "b4": b4,
    }


@functools.partial(jax.jit, static_argnames=("block_b",))
def train_model_forward(x, kp, block_b=256):
    """x: (B, 60) float32.  kp: output of prepare_params()."""
    B = x.shape[0]

    # Batch tile: multiple of 8 (f32 sublane); up to 256 to fill the MXU M dim.
    tb = min(block_b, _round_up(B, 8))
    b_pad = _round_up(B, tb)
    n_tiles = b_pad // tb

    # Zero-pad batch (to a multiple of TB) and features (60 -> 128, lane-dense).
    x_pad = jnp.zeros((b_pad, D_PAD), jnp.float32).at[:B, :D_IN].set(x)

    # Weights/biases: constant index_map -> single-buffered, VMEM-resident
    # across all grid steps (~160 KB bf16 total).
    resident = lambda shape: pl.BlockSpec(shape, lambda i: (0, 0))

    out = pl.pallas_call(
        mlp_kernel,
        out_shape=jax.ShapeDtypeStruct((b_pad, D_PAD), jnp.float32),
        grid=(n_tiles,),
        in_specs=[
            pl.BlockSpec((tb, D_PAD), lambda i: (i, 0)),   # x tile (pipelined)
            resident((D_PAD, H1)), resident((1, H1)),
            resident((H1, H2)),   resident((1, H2)),
            resident((H2, H3)),   resident((1, H3)),
            resident((H3, D_PAD)), resident((1, D_PAD)),
        ],
        out_specs=pl.BlockSpec((tb, D_PAD), lambda i: (i, 0)),
        compiler_params=pltpu.CompilerParams(
            dimension_semantics=("parallel",),   # megacore sharding on v7x
            vmem_limit_bytes=32 << 20),
    )(x_pad,
      kp["w1"], kp["b1"],
      kp["w2"], kp["b2"],
      kp["w3"], kp["b3"],
      kp["w4"], kp["b4"])

    return out[:B, :D_OUT]


def init_params(key):
    """Deterministic init, PyTorch nn.Linear layout: W (out, in), b (out,)."""
    sizes = [(128, 60), (256, 128), (128, 256), (60, 128)]
    names = ["fc1", "fc2", "fc3", "fc4"]
    params = {}
    for name, (out_f, in_f) in zip(names, sizes):
        key, kw, kb = jax.random.split(key, 3)
        bound = 1.0 / jnp.sqrt(in_f)  # same scale as PyTorch default init
        params[f"{name}_w"] = jax.random.uniform(
            kw, (out_f, in_f), jnp.float32, -bound, bound)
        params[f"{name}_b"] = jax.random.uniform(
            kb, (out_f,), jnp.float32, -bound, bound)
    return params


def reference_forward(x, params):
    """Plain-JAX f32 reference identical to the PyTorch forward."""
    h = x
    for name in ["fc1", "fc2", "fc3", "fc4"]:
        h = jnp.maximum(h @ params[f"{name}_w"].T + params[f"{name}_b"], 0.0)
    return h


if __name__ == "__main__":
    key = jax.random.PRNGKey(0)
    kx, kparam = jax.random.split(key)

    B = 8                                   # small batch
    x = jax.random.normal(kx, (B, 60), jnp.float32)
    params = init_params(kparam)
    kp = prepare_params(params)             # one-time layout conversion

    out = train_model_forward(x, kp)
    out = jax.block_until_ready(out)

    ref = reference_forward(x, params)
    assert out.shape == (B, 60)
    # bf16 MXU inputs -> relaxed tolerance vs. the f32 reference.
    assert jnp.allclose(out, ref, atol=3e-2, rtol=3e-2), "mismatch vs reference"

    print("KERNEL_OK")
</pallas_src>

<mosaic_0001>
module attributes {stable_mosaic.version = 11 : i64} {
  func.func @mlp_kernel(%arg0: i32, %arg1: memref<8x128xf32, #tpu.memory_space<vmem>>, %arg2: memref<128x128xbf16, #tpu.memory_space<vmem>>, %arg3: memref<1x128xf32, #tpu.memory_space<vmem>>, %arg4: memref<128x256xbf16, #tpu.memory_space<vmem>>, %arg5: memref<1x256xf32, #tpu.memory_space<vmem>>, %arg6: memref<256x128xbf16, #tpu.memory_space<vmem>>, %arg7: memref<1x128xf32, #tpu.memory_space<vmem>>, %arg8: memref<128x128xbf16, #tpu.memory_space<vmem>>, %arg9: memref<1x128xf32, #tpu.memory_space<vmem>>, %arg10: memref<8x128xf32, #tpu.memory_space<vmem>>) attributes {dimension_semantics = [#tpu.dimension_semantics<parallel>], iteration_bounds = array<i64: 1>, scalar_prefetch = 0 : i64, scratch_operands = 0 : i64, tpu.core_type = #tpu.core_type<tc>, window_params = [{transform_indices = @transform_0, window_bounds = array<i64: 8, 128>}, {pipeline_mode = #tpu.pipeline_mode<synchronous>, transform_indices = @transform_1, window_bounds = array<i64: 128, 128>}, {pipeline_mode = #tpu.pipeline_mode<synchronous>, transform_indices = @transform_2, window_bounds = array<i64: 1, 128>}, {pipeline_mode = #tpu.pipeline_mode<synchronous>, transform_indices = @transform_3, window_bounds = array<i64: 128, 256>}, {pipeline_mode = #tpu.pipeline_mode<synchronous>, transform_indices = @transform_4, window_bounds = array<i64: 1, 256>}, {pipeline_mode = #tpu.pipeline_mode<synchronous>, transform_indices = @transform_5, window_bounds = array<i64: 256, 128>}, {pipeline_mode = #tpu.pipeline_mode<synchronous>, transform_indices = @transform_6, window_bounds = array<i64: 1, 128>}, {pipeline_mode = #tpu.pipeline_mode<synchronous>, transform_indices = @transform_7, window_bounds = array<i64: 128, 128>}, {pipeline_mode = #tpu.pipeline_mode<synchronous>, transform_indices = @transform_8, window_bounds = array<i64: 1, 128>}, {transform_indices = @transform_9, window_bounds = array<i64: 8, 128>}]} {
    %c0 = arith.constant 0 : index
    %c0_0 = arith.constant 0 : index
    %0 = vector.load %arg1[%c0, %c0_0] : memref<8x128xf32, #tpu.memory_space<vmem>>, vector<8x128xf32>
    %1 = arith.truncf %0 : vector<8x128xf32> to vector<8x128xbf16>
    %c0_1 = arith.constant 0 : index
    %c0_2 = arith.constant 0 : index
    %2 = vector.load %arg2[%c0_1, %c0_2] : memref<128x128xbf16, #tpu.memory_space<vmem>>, vector<128x128xbf16>
    %cst = arith.constant dense<0.000000e+00> : vector<8x128xf32>
    %3 = tpu.matmul %1, %2, %cst {dimension_numbers = #tpu.dot_dimension_numbers<[1], [0], [0], [1], [0, 0, 1, 1], [], []>} : vector<8x128xbf16>, vector<128x128xbf16>, vector<8x128xf32> -> vector<8x128xf32>
    %c0_3 = arith.constant 0 : index
    %c0_4 = arith.constant 0 : index
    %4 = vector.load %arg3[%c0_3, %c0_4] : memref<1x128xf32, #tpu.memory_space<vmem>>, vector<1x128xf32>
    %5 = vector.broadcast %4 : vector<1x128xf32> to vector<8x128xf32>
    %6 = arith.addf %3, %5 : vector<8x128xf32>
    %cst_5 = arith.constant 0.000000e+00 : f32
    %7 = vector.broadcast %cst_5 : f32 to vector<8x128xf32>
    %8 = arith.maximumf %6, %7 : vector<8x128xf32>
    %9 = arith.truncf %8 : vector<8x128xf32> to vector<8x128xbf16>
    %c0_6 = arith.constant 0 : index
    %c0_7 = arith.constant 0 : index
    %10 = vector.load %arg4[%c0_6, %c0_7] : memref<128x256xbf16, #tpu.memory_space<vmem>>, vector<128x256xbf16>
    %cst_8 = arith.constant dense<0.000000e+00> : vector<8x256xf32>
    %11 = tpu.matmul %9, %10, %cst_8 {dimension_numbers = #tpu.dot_dimension_numbers<[1], [0], [0], [1], [0, 0, 1, 1], [], []>} : vector<8x128xbf16>, vector<128x256xbf16>, vector<8x256xf32> -> vector<8x256xf32>
    %c0_9 = arith.constant 0 : index
    %c0_10 = arith.constant 0 : index
    %12 = vector.load %arg5[%c0_9, %c0_10] : memref<1x256xf32, #tpu.memory_space<vmem>>, vector<1x256xf32>
    %13 = vector.broadcast %12 : vector<1x256xf32> to vector<8x256xf32>
    %14 = arith.addf %11, %13 : vector<8x256xf32>
    %cst_11 = arith.constant 0.000000e+00 : f32
    %15 = vector.broadcast %cst_11 : f32 to vector<8x256xf32>
    %16 = arith.maximumf %14, %15 : vector<8x256xf32>
    %17 = arith.truncf %16 : vector<8x256xf32> to vector<8x256xbf16>
    %c0_12 = arith.constant 0 : index
    %c0_13 = arith.constant 0 : index
    %18 = vector.load %arg6[%c0_12, %c0_13] : memref<256x128xbf16, #tpu.memory_space<vmem>>, vector<256x128xbf16>
    %cst_14 = arith.constant dense<0.000000e+00> : vector<8x128xf32>
    %19 = tpu.matmul %17, %18, %cst_14 {dimension_numbers = #tpu.dot_dimension_numbers<[1], [0], [0], [1], [0, 0, 1, 1], [], []>} : vector<8x256xbf16>, vector<256x128xbf16>, vector<8x128xf32> -> vector<8x128xf32>
    %c0_15 = arith.constant 0 : index
    %c0_16 = arith.constant 0 : index
    %20 = vector.load %arg7[%c0_15, %c0_16] : memref<1x128xf32, #tpu.memory_space<vmem>>, vector<1x128xf32>
    %21 = vector.broadcast %20 : vector<1x128xf32> to vector<8x128xf32>
    %22 = arith.addf %19, %21 : vector<8x128xf32>
    %cst_17 = arith.constant 0.000000e+00 : f32
    %23 = vector.broadcast %cst_17 : f32 to vector<8x128xf32>
    %24 = arith.maximumf %22, %23 : vector<8x128xf32>
    %25 = arith.truncf %24 : vector<8x128xf32> to vector<8x128xbf16>
    %c0_18 = arith.constant 0 : index
    %c0_19 = arith.constant 0 : index
    %26 = vector.load %arg8[%c0_18, %c0_19] : memref<128x128xbf16, #tpu.memory_space<vmem>>, vector<128x128xbf16>
    %cst_20 = arith.constant dense<0.000000e+00> : vector<8x128xf32>
    %27 = tpu.matmul %25, %26, %cst_20 {dimension_numbers = #tpu.dot_dimension_numbers<[1], [0], [0], [1], [0, 0, 1, 1], [], []>} : vector<8x128xbf16>, vector<128x128xbf16>, vector<8x128xf32> -> vector<8x128xf32>
    %c0_21 = arith.constant 0 : index
    %c0_22 = arith.constant 0 : index
    %28 = vector.load %arg9[%c0_21, %c0_22] : memref<1x128xf32, #tpu.memory_space<vmem>>, vector<1x128xf32>
    %29 = vector.broadcast %28 : vector<1x128xf32> to vector<8x128xf32>
    %30 = arith.addf %27, %29 : vector<8x128xf32>
    %cst_23 = arith.constant 0.000000e+00 : f32
    %31 = vector.broadcast %cst_23 : f32 to vector<8x128xf32>
    %32 = arith.maximumf %30, %31 : vector<8x128xf32>
    %c0_24 = arith.constant 0 : index
    %c0_25 = arith.constant 0 : index
    %33 = vector.load %arg10[%c0_24, %c0_25] : memref<8x128xf32, #tpu.memory_space<vmem>>, vector<8x128xf32>
    tpu.vector_store %arg10[%c0_24, %c0_25], %32 {strides = array<i32>} : memref<8x128xf32, #tpu.memory_space<vmem>>, vector<8x128xf32>,
    return
  }
  func.func @transform_0(%arg0: i32) -> (i32, i32) {
    %c0_i32 = arith.constant 0 : i32
    %c0_i32_0 = arith.constant 0 : i32
    return %arg0, %c0_i32 : i32, i32
  }
  func.func @transform_1(%arg0: i32) -> (i32, i32) {
    %c0_i32 = arith.constant 0 : i32
    %c0_i32_0 = arith.constant 0 : i32
    %c0_i32_1 = arith.constant 0 : i32
    return %c0_i32, %c0_i32_0 : i32, i32
  }
  func.func @transform_2(%arg0: i32) -> (i32, i32) {
    %c0_i32 = arith.constant 0 : i32
    %c0_i32_0 = arith.constant 0 : i32
    %c0_i32_1 = arith.constant 0 : i32
    return %c0_i32, %c0_i32_0 : i32, i32
  }
  func.func @transform_3(%arg0: i32) -> (i32, i32) {
    %c0_i32 = arith.constant 0 : i32
    %c0_i32_0 = arith.constant 0 : i32
    %c0_i32_1 = arith.constant 0 : i32
    return %c0_i32, %c0_i32_0 : i32, i32
  }
  func.func @transform_4(%arg0: i32) -> (i32, i32) {
    %c0_i32 = arith.constant 0 : i32
    %c0_i32_0 = arith.constant 0 : i32
    %c0_i32_1 = arith.constant 0 : i32
    return %c0_i32, %c0_i32_0 : i32, i32
  }
  func.func @transform_5(%arg0: i32) -> (i32, i32) {
    %c0_i32 = arith.constant 0 : i32
    %c0_i32_0 = arith.constant 0 : i32
    %c0_i32_1 = arith.constant 0 : i32
    return %c0_i32, %c0_i32_0 : i32, i32
  }
  func.func @transform_6(%arg0: i32) -> (i32, i32) {
    %c0_i32 = arith.constant 0 : i32
    %c0_i32_0 = arith.constant 0 : i32
    %c0_i32_1 = arith.constant 0 : i32
    return %c0_i32, %c0_i32_0 : i32, i32
  }
  func.func @transform_7(%arg0: i32) -> (i32, i32) {
    %c0_i32 = arith.constant 0 : i32
    %c0_i32_0 = arith.constant 0 : i32
    %c0_i32_1 = arith.constant 0 : i32
    return %c0_i32, %c0_i32_0 : i32, i32
  }
  func.func @transform_8(%arg0: i32) -> (i32, i32) {
    %c0_i32 = arith.constant 0 : i32
    %c0_i32_0 = arith.constant 0 : i32
    %c0_i32_1 = arith.constant 0 : i32
    return %c0_i32, %c0_i32_0 : i32, i32
  }
  func.func @transform_9(%arg0: i32) -> (i32, i32) {
    %c0_i32 = arith.constant 0 : i32
    %c0_i32_0 = arith.constant 0 : i32
    return %arg0, %c0_i32 : i32, i32
  }
}

</mosaic_0001>

<llo_original>
// kernel: train_model_forward.1
$region0: #{train_model_forward.1}
  #allocation0 [shape = 'u32[]', space=smem, size = 0x4, offset = 0x4, fixed_abs, tag = 'smem constant byte address 0x4 - core index']
  #allocation1 [shape = 'u32[144,128]{1,0:T(1,128)}', space=vmem, size = 0x12000, scoped, tag = 'internal scratch']
  %s0 = inlined_call_operand.vmem [shape: f32[8,128], index: 0, kind: input, shape index: {}]
  %s1 = inlined_call_operand.hbm [shape: bf16[128,128], index: 1, kind: input, shape index: {}]
  %s2 = inlined_call_operand.vmem [shape: f32[1,128], index: 2, kind: input, shape index: {}]
  %s3 = inlined_call_operand.hbm [shape: bf16[128,256], index: 3, kind: input, shape index: {}]
  %s4 = inlined_call_operand.vmem [shape: f32[1,256], index: 4, kind: input, shape index: {}]
  %s5 = inlined_call_operand.hbm [shape: bf16[256,128], index: 5, kind: input, shape index: {}]
  %s6 = inlined_call_operand.vmem [shape: f32[1,128], index: 6, kind: input, shape index: {}]
  %s7 = inlined_call_operand.vmem [shape: bf16[128,128], index: 7, kind: input, shape index: {}]
  %s8 = inlined_call_operand.hbm [shape: f32[1,128], index: 8, kind: input, shape index: {}]
  %s9 = inlined_call_operand.hbm [shape: f32[8,128], index: 9, kind: output, shape index: {}]
  %s10 = sld [smem:[#allocation0]]
  $region62: #{train_model_forward.1} parent=0
    _
  %s12 = ssub.s32 1, %s10
  %s13 = scalar_select 0, %s12, %s10
  $region1: #{train_model_forward.1} parent=0
    #allocation2 [shape = 'u8[32768]{0}', space=vmem, size = 0x8000, scoped, tag = 'input window, operand 1, single buffered']
    #allocation3 [shape = 's32[1]{0}', space=sflag, size = 0x4, scoped, tag = 'scoped memory for train_model_forward.1']
    #allocation4 [shape = 's32[1]{0}', space=sflag, size = 0x4, scoped, tag = 'scoped memory for train_model_forward.1']
    #allocation5 [shape = 'u8[65536]{0}', space=vmem, size = 0x10000, scoped, tag = 'input window, operand 3, single buffered']
    #allocation6 [shape = 's32[1]{0}', space=sflag, size = 0x4, scoped, tag = 'scoped memory for train_model_forward.1']
    #allocation7 [shape = 'u8[65536]{0}', space=vmem, size = 0x10000, scoped, tag = 'input window, operand 5, single buffered']
    #allocation8 [shape = 'u8[512]{0}', space=vmem, size = 0x400, scoped, tag = 'input window, operand 8, single buffered']
    #allocation9 [shape = 's32[1]{0}', space=sflag, size = 0x4, scoped, tag = 'scoped memory for train_model_forward.1']
    #allocation10 [shape = 'u8[4096]{0}', space=vmem, size = 0x1000, scoped, tag = 'output window, operand 0, single buffered']
    %14 = vsyncpa [#allocation3], 0
    %15 = vsyncpa [#allocation6], 0
    %16 = vsyncpa [#allocation9], 0
    %17 = vsyncpa [#allocation4], 0
    // Predicated region
    $region2: #{train_model_forward.1} parent=1 // pred_check
      _
    $region3: #{train_model_forward.1} parent=1 // pred_check_branch
      %19 = sbr.rel (0) target = $region5
    $region4: #{train_model_forward.1} parent=1 // pred_region
      _
    $region5: #{train_model_forward.1} parent=1 // pred_fallthru
      _
    // Predicated region
    $region6: #{train_model_forward.1} parent=1 // pred_check
      _
    $region7: #{train_model_forward.1} parent=1 // pred_check_branch
      %21 = sbr.rel (0) target = $region9
    $region8: #{train_model_forward.1} parent=1 // pred_region
      %s23 = ssub.s32 1024, 1024
      %24 = vsyncadd [#allocation3], %s23
      %s25 = sshll.u32 [#allocation2], 4
      %s26 = int_to_ptr.vmem [resolvable:$true] %s25
      %31 = dma.hbm_to_vmem [thread:$0]  %s1, 1024, %s26, [#allocation3], 64, 64, 4
    $region9: #{train_model_forward.1} parent=1 // pred_fallthru
      _
    // Predicated region
    $region10: #{train_model_forward.1} parent=1 // pred_check
      _
    $region11: #{train_model_forward.1} parent=1 // pred_check_branch
      %33 = sbr.rel (0) target = $region13
    $region12: #{train_model_forward.1} parent=1 // pred_region
      _
    $region13: #{train_model_forward.1} parent=1 // pred_fallthru
      _
    // Predicated region
    $region14: #{train_model_forward.1} parent=1 // pred_check
      _
    $region15: #{train_model_forward.1} parent=1 // pred_check_branch
      %35 = sbr.rel (0) target = $region17
    $region16: #{train_model_forward.1} parent=1 // pred_region
      %s37 = ssub.s32 2048, 2048
      %38 = vsyncadd [#allocation6], %s37
      %s39 = sshll.u32 [#allocation5], 4
      %s40 = int_to_ptr.vmem [resolvable:$true] %s39
      %45 = dma.hbm_to_vmem [thread:$0]  %s3, 2048, %s40, [#allocation6], 128, 128, 8
    $region17: #{train_model_forward.1} parent=1 // pred_fallthru
      _
    // Predicated region
    $region18: #{train_model_forward.1} parent=1 // pred_check
      _
    $region19: #{train_model_forward.1} parent=1 // pred_check_branch
      %47 = sbr.rel (0) target = $region21
    $region20: #{train_model_forward.1} parent=1 // pred_region
      _
    $region21: #{train_model_forward.1} parent=1 // pred_fallthru
      _
    // Predicated region
    $region22: #{train_model_forward.1} parent=1 // pred_check
      _
    $region23: #{train_model_forward.1} parent=1 // pred_check_branch
      %49 = sbr.rel (0) target = $region25
    $region24: #{train_model_forward.1} parent=1 // pred_region
      %s51 = ssub.s32 2048, 2048
      %52 = vsyncadd [#allocation6], %s51
      %s53 = sshll.u32 [#allocation7], 4
      %s54 = int_to_ptr.vmem [resolvable:$true] %s53
      %59 = dma.hbm_to_vmem [thread:$0]  %s5, 2048, %s54, [#allocation6], 64, 64, 4
    $region25: #{train_model_forward.1} parent=1 // pred_fallthru
      _
    // Predicated region
    $region26: #{train_model_forward.1} parent=1 // pred_check
      _
    $region27: #{train_model_forward.1} parent=1 // pred_check_branch
      %61 = sbr.rel (0) target = $region29
    $region28: #{train_model_forward.1} parent=1 // pred_region
      _
    $region29: #{train_model_forward.1} parent=1 // pred_fallthru
      _
    // Predicated region
    $region30: #{train_model_forward.1} parent=1 // pred_check
      _
    $region31: #{train_model_forward.1} parent=1 // pred_check_branch
      %63 = sbr.rel (0) target = $region33
    $region32: #{train_model_forward.1} parent=1 // pred_region
      _
    $region33: #{train_model_forward.1} parent=1 // pred_fallthru
      _
    // Predicated region
    $region34: #{train_model_forward.1} parent=1 // pred_check
      _
    $region35: #{train_model_forward.1} parent=1 // pred_check_branch
      %65 = sbr.rel (0) target = $region37
    $region36: #{train_model_forward.1} parent=1 // pred_region
      %s67 = ssub.s32 16, 16
      %68 = vsyncadd [#allocation9], %s67
      %s70 = sshll.u32 [#allocation8], 4
      %s71 = int_to_ptr.vmem [resolvable:$true] %s70
      %73 = dma.hbm_to_vmem [thread:$0]  %s8, 16, %s71, [#allocation9]
    $region37: #{train_model_forward.1} parent=1 // pred_fallthru
      _
    // Predicated region
    $region38: #{train_model_forward.1} parent=1 // pred_check
      _
    $region39: #{train_model_forward.1} parent=1 // pred_check_branch
      %75 = sbr.rel (0) target = $region41
    $region40: #{train_model_forward.1} parent=1 // pred_region
      %76 = dma.done [#allocation3], 1024
    $region41: #{train_model_forward.1} parent=1 // pred_fallthru
      _
    // Predicated region
    $region42: #{train_model_forward.1} parent=1 // pred_check
      _
    $region43: #{train_model_forward.1} parent=1 // pred_check_branch
      %78 = sbr.rel (0) target = $region45
    $region44: #{train_model_forward.1} parent=1 // pred_region
      %79 = dma.done [#allocation6], 2048
    $region45: #{train_model_forward.1} parent=1 // pred_fallthru
      _
    // Predicated region
    $region46: #{train_model_forward.1} parent=1 // pred_check
      _
    $region47: #{train_model_forward.1} parent=1 // pred_check_branch
      %81 = sbr.rel (0) target = $region49
    $region48: #{train_model_forward.1} parent=1 // pred_region
      %82 = dma.done [#allocation6], 2048
    $region49: #{train_model_forward.1} parent=1 // pred_fallthru
      _
    // Predicated region
    $region50: #{train_model_forward.1} parent=1 // pred_check
      _
    $region51: #{train_model_forward.1} parent=1 // pred_check_branch
      %84 = sbr.rel (0) target = $region53
    $region52: #{train_model_forward.1} parent=1 // pred_region
      %85 = dma.done [#allocation9], 16
    $region53: #{train_model_forward.1} parent=1 // pred_fallthru
      _
    %v87 = vld [vmem:[%s0] sm:$0xff]
    %v88 = vpack.c.bf16 %v87, %v87
    %v89 = vld [vmem:[#allocation2] sm:$0xf]
    %v90 = vld [vmem:[#allocation2 + $0x4] sm:$0xf]
    %v91 = vld [vmem:[#allocation2 + $0x8] sm:$0xf]
    %v92 = vld [vmem:[#allocation2 + $0xc] sm:$0xf]
    %v93 = vld [vmem:[#allocation2 + $0x10] sm:$0xf]
    %v94 = vld [vmem:[#allocation2 + $0x14] sm:$0xf]
    %v95 = vld [vmem:[#allocation2 + $0x18] sm:$0xf]
    %v96 = vld [vmem:[#allocation2 + $0x1c] sm:$0xf]
    %v97 = vld [vmem:[#allocation2 + $0x20] sm:$0xf]
    %v98 = vld [vmem:[#allocation2 + $0x24] sm:$0xf]
    %v99 = vld [vmem:[#allocation2 + $0x28] sm:$0xf]
    %v100 = vld [vmem:[#allocation2 + $0x2c] sm:$0xf]
    %v101 = vld [vmem:[#allocation2 + $0x30] sm:$0xf]
    %v102 = vld [vmem:[#allocation2 + $0x34] sm:$0xf]
    %v103 = vld [vmem:[#allocation2 + $0x38] sm:$0xf]
    %v104 = vld [vmem:[#allocation2 + $0x3c] sm:$0xf]
    %v105 = vld [vmem:[%s2] sm:$0x1]
    %v107 = vlaneseq
    %v108 = vshrl.u32 %v107, 7
    %v109 = vsub.s32 0, %v108
    %v110 = vrot.slane %v105, %v109
    %v128 = vunpack.c.l.b16 %v89
    %v129 = vunpack.c.l.b16 %v90
    %v130 = vunpack.c.l.b16 %v91
    %v131 = vunpack.c.l.b16 %v92
    %v132 = vunpack.c.l.b16 %v93
    %v133 = vunpack.c.l.b16 %v94
    %v134 = vunpack.c.l.b16 %v95
    %v135 = vunpack.c.l.b16 %v96
    %v136 = vunpack.c.l.b16 %v97
    %v137 = vunpack.c.l.b16 %v98
    %v138 = vunpack.c.l.b16 %v99
    %v139 = vunpack.c.l.b16 %v100
    %v140 = vunpack.c.l.b16 %v101
    %v141 = vunpack.c.l.b16 %v102
    %v142 = vunpack.c.l.b16 %v103
    %v143 = vunpack.c.l.b16 %v104
    %v144 = vpack.c.b16 %v129, %v128
    %v145 = vpack.c.b16 %v131, %v130
    %v146 = vpack.c.b16 %v133, %v132
    %v147 = vpack.c.b16 %v135, %v134
    %v148 = vpack.c.b16 %v137, %v136
    %v149 = vpack.c.b16 %v139, %v138
    %v150 = vpack.c.b16 %v141, %v140
    %v151 = vpack.c.b16 %v143, %v142
    %160 = vmatprep.subr.bf16.mxu0 0
    %161 = vmatpush1.bf16.msra.mxu0 %v144
    %162 = vmatprep.subr.bf16.mxu0 0
    %163 = vmatpush1.bf16.msra.mxu0 %v145
    %164 = vmatprep.subr.bf16.mxu0 0
    %165 = vmatpush1.bf16.msra.mxu0 %v146
    %166 = vmatprep.subr.bf16.mxu0 0
    %167 = vmatpush1.bf16.msra.mxu0 %v147
    %168 = vmatprep.subr.bf16.mxu0 0
    %169 = vmatpush1.bf16.msra.mxu0 %v148
    %170 = vmatprep.subr.bf16.mxu0 0
    %171 = vmatpush1.bf16.msra.mxu0 %v149
    %172 = vmatprep.subr.bf16.mxu0 0
    %173 = vmatpush1.bf16.msra.mxu0 %v150
    %174 = vmatprep.subr.bf16.mxu0 0
    %175 = vmatpush1.bf16.msra.mxu0 %v151
    %176 = vmatprep.subr.bf16.mxu0 0
    %177 = vmatpush1.bf16.msra.mxu0 0
    %178 = vmatprep.subr.bf16.mxu0 0
    %179 = vmatpush1.bf16.msra.mxu0 0
    %180 = vmatprep.subr.bf16.mxu0 0
    %181 = vmatpush1.bf16.msra.mxu0 0
    %182 = vmatprep.subr.bf16.mxu0 0
    %183 = vmatpush1.bf16.msra.mxu0 0
    %184 = vmatprep.subr.bf16.mxu0 0
    %185 = vmatpush1.bf16.msra.mxu0 0
    %186 = vmatprep.subr.bf16.mxu0 0
    %187 = vmatpush1.bf16.msra.mxu0 0
    %188 = vmatprep.subr.bf16.mxu0 0
    %189 = vmatpush1.bf16.msra.mxu0 0
    %190 = vmatprep.subr.bf16.mxu0 0
    %191 = vmatpush1.bf16.msra.mxu0 0
    %192 = vmatprep.mubr.bf16.mxu0 0
    %193 = vmatmul.mubr.bf16.gmra.mrb[0].mxu0 %v88
    %v194 = vpop.f32.mrb[0].mxu0
    %v195 = vadd.f32 %v110, %v194
    %v196 = vpop.f32.mrb[0].mxu0
    %v197 = vpop.f32.mrb[0].mxu0
    %v198 = vpop.f32.mrb[0].mxu0
    %199 = vdwg.mxu0
    %v200 = vmax.f32 %v195, 0.0
    %v201 = vpack.c.bf16 %v200, %v200
    %v202 = vld [vmem:[#allocation5] sm:$0xff]
    %v203 = vld [vmem:[#allocation5 + $0x8] sm:$0xff]
    %v204 = vld [vmem:[#allocation5 + $0x10] sm:$0xff]
    %v205 = vld [vmem:[#allocation5 + $0x18] sm:$0xff]
    %v206 = vld [vmem:[#allocation5 + $0x20] sm:$0xff]
    %v207 = vld [vmem:[#allocation5 + $0x28] sm:$0xff]
    %v208 = vld [vmem:[#allocation5 + $0x30] sm:$0xff]
    %v209 = vld [vmem:[#allocation5 + $0x38] sm:$0xff]
    %v210 = vld [vmem:[#allocation5 + $0x40] sm:$0xff]
    %v211 = vld [vmem:[#allocation5 + $0x48] sm:$0xff]
    %v212 = vld [vmem:[#allocation5 + $0x50] sm:$0xff]
    %v213 = vld [vmem:[#allocation5 + $0x58] sm:$0xff]
    %v214 = vld [vmem:[#allocation5 + $0x60] sm:$0xff]
    %v215 = vld [vmem:[#allocation5 + $0x68] sm:$0xff]
    %v216 = vld [vmem:[#allocation5 + $0x70] sm:$0xff]
    %v217 = vld [vmem:[#allocation5 + $0x78] sm:$0xff]
    %v218 = vld [vmem:[%s4] sm:$0x3]
    %v220 = vlaneseq
    %v221 = vshrl.u32 %v220, 7
    %v222 = vsub.s32 0, %v221
    %v223 = vrot.slane %v218, %v222
    %v224 = vlaneseq
    %v225 = vshrl.u32 %v224, 7
    %v226 = vsub.s32 1, %v225
    %v227 = vrot.slane %v218, %v226
    %v246 = vunpack.c.l.b16 %v202
    %v247 = vunpack.c.h.b16 %v202
    %v248 = vunpack.c.l.b16 %v203
    %v249 = vunpack.c.h.b16 %v203
    %v250 = vunpack.c.l.b16 %v204
    %v251 = vunpack.c.h.b16 %v204
    %v252 = vunpack.c.l.b16 %v205
    %v253 = vunpack.c.h.b16 %v205
    %v254 = vunpack.c.l.b16 %v206
    %v255 = vunpack.c.h.b16 %v206
    %v256 = vunpack.c.l.b16 %v207
    %v257 = vunpack.c.h.b16 %v207
    %v258 = vunpack.c.l.b16 %v208
    %v259 = vunpack.c.h.b16 %v208
    %v260 = vunpack.c.l.b16 %v209
    %v261 = vunpack.c.h.b16 %v209
    %v262 = vunpack.c.l.b16 %v210
    %v263 = vunpack.c.h.b16 %v210
    %v264 = vunpack.c.l.b16 %v211
    %v265 = vunpack.c.h.b16 %v211
    %v266 = vunpack.c.l.b16 %v212
    %v267 = vunpack.c.h.b16 %v212
    %v268 = vunpack.c.l.b16 %v213
    %v269 = vunpack.c.h.b16 %v213
    %v270 = vunpack.c.l.b16 %v214
    %v271 = vunpack.c.h.b16 %v214
    %v272 = vunpack.c.l.b16 %v215
    %v273 = vunpack.c.h.b16 %v215
    %v274 = vunpack.c.l.b16 %v216
    %v275 = vunpack.c.h.b16 %v216
    %v276 = vunpack.c.l.b16 %v217
    %v277 = vunpack.c.h.b16 %v217
    %v278 = vpack.c.b16 %v248, %v246
    %v279 = vpack.c.b16 %v249, %v247
    %v280 = vpack.c.b16 %v252, %v250
    %v281 = vpack.c.b16 %v253, %v251
    %v282 = vpack.c.b16 %v256, %v254
    %v283 = vpack.c.b16 %v257, %v255
    %v284 = vpack.c.b16 %v260, %v258
    %v285 = vpack.c.b16 %v261, %v259
    %v286 = vpack.c.b16 %v264, %v262
    %v287 = vpack.c.b16 %v265, %v263
    %v288 = vpack.c.b16 %v268, %v266
    %v289 = vpack.c.b16 %v269, %v267
    %v290 = vpack.c.b16 %v272, %v270
    %v291 = vpack.c.b16 %v273, %v271
    %v292 = vpack.c.b16 %v276, %v274
    %v293 = vpack.c.b16 %v277, %v275
    %310 = vmatprep.subr.bf16.mxu0 %v279
    %311 = vmatpush1.bf16.msra.mxu0 %v278
    %312 = vmatprep.subr.bf16.mxu0 %v281
    %313 = vmatpush1.bf16.msra.mxu0 %v280
    %314 = vmatprep.subr.bf16.mxu0 %v283
    %315 = vmatpush1.bf16.msra.mxu0 %v282
    %316 = vmatprep.subr.bf16.mxu0 %v285
    %317 = vmatpush1.bf16.msra.mxu0 %v284
    %318 = vmatprep.subr.bf16.mxu0 %v287
    %319 = vmatpush1.bf16.msra.mxu0 %v286
    %320 = vmatprep.subr.bf16.mxu0 %v289
    %321 = vmatpush1.bf16.msra.mxu0 %v288
    %322 = vmatprep.subr.bf16.mxu0 %v291
    %323 = vmatpush1.bf16.msra.mxu0 %v290
    %324 = vmatprep.subr.bf16.mxu0 %v293
    %325 = vmatpush1.bf16.msra.mxu0 %v292
    %326 = vmatprep.subr.bf16.mxu0 0
    %327 = vmatpush1.bf16.msra.mxu0 0
    %328 = vmatprep.subr.bf16.mxu0 0
    %329 = vmatpush1.bf16.msra.mxu0 0
    %330 = vmatprep.subr.bf16.mxu0 0
    %331 = vmatpush1.bf16.msra.mxu0 0
    %332 = vmatprep.subr.bf16.mxu0 0
    %333 = vmatpush1.bf16.msra.mxu0 0
    %334 = vmatprep.subr.bf16.mxu0 0
    %335 = vmatpush1.bf16.msra.mxu0 0
    %336 = vmatprep.subr.bf16.mxu0 0
    %337 = vmatpush1.bf16.msra.mxu0 0
    %338 = vmatprep.subr.bf16.mxu0 0
    %339 = vmatpush1.bf16.msra.mxu0 0
    %340 = vmatprep.subr.bf16.mxu0 0
    %341 = vmatpush1.bf16.msra.mxu0 0
    %342 = vmatprep.mubr.bf16.mxu0 0
    %343 = vmatmul.mubr.bf16.gmra.mrb[0].mxu0 %v201
    %v344 = vpop.f32.mrb[0].mxu0
    %v345 = vadd.f32 %v223, %v344
    %v346 = vpop.f32.mrb[0].mxu0
    %v347 = vadd.f32 %v227, %v346
    %v348 = vpop.f32.mrb[0].mxu0
    %v349 = vpop.f32.mrb[0].mxu0
    %350 = vdwg.mxu0
    %v351 = vmax.f32 %v345, 0.0
    %v352 = vmax.f32 %v347, 0.0
    %v353 = vpack.c.bf16 %v351, %v351
    %v354 = vpack.c.bf16 %v352, %v352
    %v355 = vld [vmem:[#allocation7] sm:$0xf]
    %v356 = vld [vmem:[#allocation7 + $0x4] sm:$0xf]
    %v357 = vld [vmem:[#allocation7 + $0x8] sm:$0xf]
    %v358 = vld [vmem:[#allocation7 + $0xc] sm:$0xf]
    %v359 = vld [vmem:[#allocation7 + $0x10] sm:$0xf]
    %v360 = vld [vmem:[#allocation7 + $0x14] sm:$0xf]
    %v361 = vld [vmem:[#allocation7 + $0x18] sm:$0xf]
    %v362 = vld [vmem:[#allocation7 + $0x1c] sm:$0xf]
    %v363 = vld [vmem:[#allocation7 + $0x20] sm:$0xf]
    %v364 = vld [vmem:[#allocation7 + $0x24] sm:$0xf]
    %v365 = vld [vmem:[#allocation7 + $0x28] sm:$0xf]
    %v366 = vld [vmem:[#allocation7 + $0x2c] sm:$0xf]
    %v367 = vld [vmem:[#allocation7 + $0x30] sm:$0xf]
    %v368 = vld [vmem:[#allocation7 + $0x34] sm:$0xf]
    %v369 = vld [vmem:[#allocation7 + $0x38] sm:$0xf]
    %v370 = vld [vmem:[#allocation7 + $0x3c] sm:$0xf]
    %v371 = vld [vmem:[#allocation7 + $0x40] sm:$0xf]
    %v372 = vld [vmem:[#allocation7 + $0x44] sm:$0xf]
    %v373 = vld [vmem:[#allocation7 + $0x48] sm:$0xf]
    %v374 = vld [vmem:[#allocation7 + $0x4c] sm:$0xf]
    %v375 = vld [vmem:[#allocation7 + $0x50] sm:$0xf]
    %v376 = vld [vmem:[#allocation7 + $0x54] sm:$0xf]
    %v377 = vld [vmem:[#allocation7 + $0x58] sm:$0xf]
    %v378 = vld [vmem:[#allocation7 + $0x5c] sm:$0xf]
    %v379 = vld [vmem:[#allocation7 + $0x60] sm:$0xf]
    %v380 = vld [vmem:[#allocation7 + $0x64] sm:$0xf]
    %v381 = vld [vmem:[#allocation7 + $0x68] sm:$0xf]
    %v382 = vld [vmem:[#allocation7 + $0x6c] sm:$0xf]
    %v383 = vld [vmem:[#allocation7 + $0x70] sm:$0xf]
    %v384 = vld [vmem:[#allocation7 + $0x74] sm:$0xf]
    %v385 = vld [vmem:[#allocation7 + $0x78] sm:$0xf]
    %v386 = vld [vmem:[#allocation7 + $0x7c] sm:$0xf]
    %v387 = vld [vmem:[%s6] sm:$0x1]
    %v389 = vlaneseq
    %v390 = vshrl.u32 %v389, 7
    %v391 = vsub.s32 0, %v390
    %v392 = vrot.slane %v387, %v391
    %v426 = vunpack.c.l.b16 %v355
    %v427 = vunpack.c.l.b16 %v356
    %v428 = vunpack.c.l.b16 %v357
    %v429 = vunpack.c.l.b16 %v358
    %v430 = vunpack.c.l.b16 %v359
    %v431 = vunpack.c.l.b16 %v360
    %v432 = vunpack.c.l.b16 %v361
    %v433 = vunpack.c.l.b16 %v362
    %v434 = vunpack.c.l.b16 %v363
    %v435 = vunpack.c.l.b16 %v364
    %v436 = vunpack.c.l.b16 %v365
    %v437 = vunpack.c.l.b16 %v366
    %v438 = vunpack.c.l.b16 %v367
    %v439 = vunpack.c.l.b16 %v368
    %v440 = vunpack.c.l.b16 %v369
    %v441 = vunpack.c.l.b16 %v370
    %v442 = vunpack.c.l.b16 %v371
    %v443 = vunpack.c.l.b16 %v372
    %v444 = vunpack.c.l.b16 %v373
    %v445 = vunpack.c.l.b16 %v374
    %v446 = vunpack.c.l.b16 %v375
    %v447 = vunpack.c.l.b16 %v376
    %v448 = vunpack.c.l.b16 %v377
    %v449 = vunpack.c.l.b16 %v378
    %v450 = vunpack.c.l.b16 %v379
    %v451 = vunpack.c.l.b16 %v380
    %v452 = vunpack.c.l.b16 %v381
    %v453 = vunpack.c.l.b16 %v382
    %v454 = vunpack.c.l.b16 %v383
    %v455 = vunpack.c.l.b16 %v384
    %v456 = vunpack.c.l.b16 %v385
    %v457 = vunpack.c.l.b16 %v386
    %v458 = vpack.c.b16 %v427, %v426
    %v459 = vpack.c.b16 %v429, %v428
    %v460 = vpack.c.b16 %v431, %v430
    %v461 = vpack.c.b16 %v433, %v432
    %v462 = vpack.c.b16 %v435, %v434
    %v463 = vpack.c.b16 %v437, %v436
    %v464 = vpack.c.b16 %v439, %v438
    %v465 = vpack.c.b16 %v441, %v440
    %v466 = vpack.c.b16 %v443, %v442
    %v467 = vpack.c.b16 %v445, %v444
    %v468 = vpack.c.b16 %v447, %v446
    %v469 = vpack.c.b16 %v449, %v448
    %v470 = vpack.c.b16 %v451, %v450
    %v471 = vpack.c.b16 %v453, %v452
    %v472 = vpack.c.b16 %v455, %v454
    %v473 = vpack.c.b16 %v457, %v456
    %490 = vmatprep.subr.bf16.mxu0 0
    %491 = vmatpush1.bf16.msra.mxu0 %v458
    %492 = vmatprep.subr.bf16.mxu0 0
    %493 = vmatpush1.bf16.msra.mxu0 %v459
    %494 = vmatprep.subr.bf16.mxu0 0
    %495 = vmatpush1.bf16.msra.mxu0 %v460
    %496 = vmatprep.subr.bf16.mxu0 0
    %497 = vmatpush1.bf16.msra.mxu0 %v461
    %498 = vmatprep.subr.bf16.mxu0 0
    %499 = vmatpush1.bf16.msra.mxu0 %v462
    %500 = vmatprep.subr.bf16.mxu0 0
    %501 = vmatpush1.bf16.msra.mxu0 %v463
    %502 = vmatprep.subr.bf16.mxu0 0
    %503 = vmatpush1.bf16.msra.mxu0 %v464
    %504 = vmatprep.subr.bf16.mxu0 0
    %505 = vmatpush1.bf16.msra.mxu0 %v465
    %506 = vmatprep.subr.bf16.mxu0 0
    %507 = vmatpush1.bf16.msra.mxu0 %v466
    %508 = vmatprep.subr.bf16.mxu0 0
    %509 = vmatpush1.bf16.msra.mxu0 %v467
    %510 = vmatprep.subr.bf16.mxu0 0
    %511 = vmatpush1.bf16.msra.mxu0 %v468
    %512 = vmatprep.subr.bf16.mxu0 0
    %513 = vmatpush1.bf16.msra.mxu0 %v469
    %514 = vmatprep.subr.bf16.mxu0 0
    %515 = vmatpush1.bf16.msra.mxu0 %v470
    %516 = vmatprep.subr.bf16.mxu0 0
    %517 = vmatpush1.bf16.msra.mxu0 %v471
    %518 = vmatprep.subr.bf16.mxu0 0
    %519 = vmatpush1.bf16.msra.mxu0 %v472
    %520 = vmatprep.subr.bf16.mxu0 0
    %521 = vmatpush1.bf16.msra.mxu0 %v473
    %522 = vmatprep.mubr.bf16.mxu0 %v354
    %523 = vmatmul.mubr.bf16.gmra.mrb[0].mxu0 %v353
    %v524 = vpop.f32.mrb[0].mxu0
    %v525 = vadd.f32 %v392, %v524
    %v526 = vpop.f32.mrb[0].mxu0
    %v527 = vpop.f32.mrb[0].mxu0
    %v528 = vpop.f32.mrb[0].mxu0
    %529 = vdwg.mxu0
    %v530 = vmax.f32 %v525, 0.0
    %v531 = vpack.c.bf16 %v530, %v530
    %v532 = vld [vmem:[%s7] sm:$0xf]
    %v533 = vld [vmem:[%s7 + $0x4] sm:$0xf]
    %v534 = vld [vmem:[%s7 + $0x8] sm:$0xf]
    %v535 = vld [vmem:[%s7 + $0xc] sm:$0xf]
    %v536 = vld [vmem:[%s7 + $0x10] sm:$0xf]
    %v537 = vld [vmem:[%s7 + $0x14] sm:$0xf]
    %v538 = vld [vmem:[%s7 + $0x18] sm:$0xf]
    %v539 = vld [vmem:[%s7 + $0x1c] sm:$0xf]
    %v540 = vld [vmem:[%s7 + $0x20] sm:$0xf]
    %v541 = vld [vmem:[%s7 + $0x24] sm:$0xf]
    %v542 = vld [vmem:[%s7 + $0x28] sm:$0xf]
    %v543 = vld [vmem:[%s7 + $0x2c] sm:$0xf]
    %v544 = vld [vmem:[%s7 + $0x30] sm:$0xf]
    %v545 = vld [vmem:[%s7 + $0x34] sm:$0xf]
    %v546 = vld [vmem:[%s7 + $0x38] sm:$0xf]
    %v547 = vld [vmem:[%s7 + $0x3c] sm:$0xf]
    %v548 = vld [vmem:[#allocation8] sm:$0x1]
    %v550 = vlaneseq
    %v551 = vshrl.u32 %v550, 7
    %v552 = vsub.s32 0, %v551
    %v553 = vrot.slane %v548, %v552
    %v571 = vunpack.c.l.b16 %v532
    %v572 = vunpack.c.l.b16 %v533
    %v573 = vunpack.c.l.b16 %v534
    %v574 = vunpack.c.l.b16 %v535
    %v575 = vunpack.c.l.b16 %v536
    %v576 = vunpack.c.l.b16 %v537
    %v577 = vunpack.c.l.b16 %v538
    %v578 = vunpack.c.l.b16 %v539
    %v579 = vunpack.c.l.b16 %v540
    %v580 = vunpack.c.l.b16 %v541
    %v581 = vunpack.c.l.b16 %v542
    %v582 = vunpack.c.l.b16 %v543
    %v583 = vunpack.c.l.b16 %v544
    %v584 = vunpack.c.l.b16 %v545
    %v585 = vunpack.c.l.b16 %v546
    %v586 = vunpack.c.l.b16 %v547
    %v587 = vpack.c.b16 %v572, %v571
    %v588 = vpack.c.b16 %v574, %v573
    %v589 = vpack.c.b16 %v576, %v575
    %v590 = vpack.c.b16 %v578, %v577
    %v591 = vpack.c.b16 %v580, %v579
    %v592 = vpack.c.b16 %v582, %v581
    %v593 = vpack.c.b16 %v584, %v583
    %v594 = vpack.c.b16 %v586, %v585
    %603 = vmatprep.subr.bf16.mxu0 0
    %604 = vmatpush1.bf16.msra.mxu0 %v587
    %605 = vmatprep.subr.bf16.mxu0 0
    %606 = vmatpush1.bf16.msra.mxu0 %v588
    %607 = vmatprep.subr.bf16.mxu0 0
    %608 = vmatpush1.bf16.msra.mxu0 %v589
    %609 = vmatprep.subr.bf16.mxu0 0
    %610 = vmatpush1.bf16.msra.mxu0 %v590
    %611 = vmatprep.subr.bf16.mxu0 0
    %612 = vmatpush1.bf16.msra.mxu0 %v591
    %613 = vmatprep.subr.bf16.mxu0 0
    %614 = vmatpush1.bf16.msra.mxu0 %v592
    %615 = vmatprep.subr.bf16.mxu0 0
    %616 = vmatpush1.bf16.msra.mxu0 %v593
    %617 = vmatprep.subr.bf16.mxu0 0
    %618 = vmatpush1.bf16.msra.mxu0 %v594
    %619 = vmatprep.subr.bf16.mxu0 0
    %620 = vmatpush1.bf16.msra.mxu0 0
    %621 = vmatprep.subr.bf16.mxu0 0
    %622 = vmatpush1.bf16.msra.mxu0 0
    %623 = vmatprep.subr.bf16.mxu0 0
    %624 = vmatpush1.bf16.msra.mxu0 0
    %625 = vmatprep.subr.bf16.mxu0 0
    %626 = vmatpush1.bf16.msra.mxu0 0
    %627 = vmatprep.subr.bf16.mxu0 0
    %628 = vmatpush1.bf16.msra.mxu0 0
    %629 = vmatprep.subr.bf16.mxu0 0
    %630 = vmatpush1.bf16.msra.mxu0 0
    %631 = vmatprep.subr.bf16.mxu0 0
    %632 = vmatpush1.bf16.msra.mxu0 0
    %633 = vmatprep.subr.bf16.mxu0 0
    %634 = vmatpush1.bf16.msra.mxu0 0
    %635 = vmatprep.mubr.bf16.mxu0 0
    %636 = vmatmul.mubr.bf16.gmra.mrb[0].mxu0 %v531
    %v637 = vpop.f32.mrb[0].mxu0
    %v638 = vadd.f32 %v553, %v637
    %v639 = vpop.f32.mrb[0].mxu0
    %v640 = vpop.f32.mrb[0].mxu0
    %v641 = vpop.f32.mrb[0].mxu0
    %642 = vdwg.mxu0
    %v643 = vmax.f32 %v638, 0.0
    %644 = vst [vmem:[#allocation10] sm:$0xff] %v643
    // Predicated region
    $region54: #{train_model_forward.1} parent=1 // pred_check
      _
    $region55: #{train_model_forward.1} parent=1 // pred_check_branch
      %646 = sbr.rel (0) target = $region57
    $region56: #{train_model_forward.1} parent=1 // pred_region
      %s648 = ssub.s32 128, 128
      %649 = vsyncadd [#allocation4], %s648
      %s651 = sshll.u32 [#allocation10], 4
      %s652 = int_to_ptr.vmem [resolvable:$true] %s651
      %654 = dma.vmem_to_hbm [thread:$0]  %s652, 128, %s9, [#allocation4]
    $region57: #{train_model_forward.1} parent=1 // pred_fallthru
      _
    // Predicated region
    $region58: #{train_model_forward.1} parent=1 // pred_check
      _
    $region59: #{train_model_forward.1} parent=1 // pred_check_branch
      %656 = sbr.rel (0) target = $region61
    $region60: #{train_model_forward.1} parent=1 // pred_region
      %657 = dma.done [#allocation4], 128
    $region61: #{train_model_forward.1} parent=1 // pred_fallthru
      _
    %658 = vsyncpa [#allocation3], 1
    %659 = vsyncpa [#allocation6], 1
    %660 = vsyncpa [#allocation9], 1
    %661 = vsyncpa [#allocation4], 1

</llo_original>
